<compile_context>
chip_gen: v7x
topology: tpu7x:2x2x1
jax: 0.10.0
libtpu: 0.0.40
codegen_flags: <defaults>
</compile_context>

<pallas_src>
import math
import functools

import jax
import jax.numpy as jnp
from jax.experimental import pallas as pl
from jax.experimental.pallas import tpu as pltpu


def _round_up(x, m):
    return ((x + m - 1) // m) * m


def _channel_attn_kernel(x_ref, wk_ref, mask_ref, woT_ref, bo_ref, o_ref,
                         out_scr, *, K, Wp, Lz, scale):
    j = pl.program_id(1)

    # Heavy per-batch work (conv + attention) only on the first fc_o tile;
    # the result stays resident in VMEM scratch for the remaining tiles.
    @pl.when(j == 0)
    def _():
        C = out_scr.shape[0]

        # --- 3x3 conv (+ folded bias) as K*K shifted-slice matmuls on the
        #     flattened padded grid.  Garbage at non-interior positions is
        #     zeroed by the mask below.
        z = jnp.zeros((C, Lz), jnp.float32)
        for kh in range(K):
            for kw in range(K):
                start = kh * Wp + kw                                  # static
                xs = x_ref[0, :, start:start + Lz]                    # (C+1, Lz) bf16
                z = z + jnp.dot(wk_ref[kh * K + kw], xs,
                                preferred_element_type=jnp.float32)
        y = (z * mask_ref[...]).astype(jnp.bfloat16)                  # (C, Lz)

        # --- channel attention: softmax(y @ y^T / sqrt(HW)) @ y   (h=1).
        gram = jax.lax.dot_general(                                   # NT matmul,
            y, y, (((1,), (1,)), ((), ())),                           # no transpose
            preferred_element_type=jnp.float32)                       # (C, C)
        logits = gram * scale
        logits = logits - jnp.max(logits, axis=-1, keepdims=True)
        e = jnp.exp(logits)
        inv = pl.reciprocal(jnp.sum(e, axis=-1, keepdims=True), approx=True)
        att = (e * inv).astype(jnp.bfloat16)                          # (C, C)
        # TODO(synk): nn.Dropout(0.1) on attention weights is identity in eval mode; omitted.
        out_scr[...] = jnp.dot(att, y,
                               preferred_element_type=jnp.float32
                               ).astype(jnp.bfloat16)                 # (C, Lz)

    # --- fc_o output tile j: (C, Lz) @ (Lz, tile_n) + bias.
    o_ref[0] = (jnp.dot(out_scr[...], woT_ref[...],
                        preferred_element_type=jnp.float32)
                + bo_ref[...]).astype(o_ref.dtype)


def channel_attention_forward(x, w_conv, b_conv, w_o, b_o, kernel_size=3):
    """x: (B, C, H, W) NCHW.  Returns (B, C, H*W), matching the PyTorch module."""
    B, C, H, W = x.shape
    K = kernel_size
    P = (K - 1) // 2
    HW = H * W
    Hp, Wp = H + 2 * P, W + 2 * P
    Lq = Hp * Wp                           # flattened padded-grid length
    Lz = _round_up(Lq, 128)                # lane-dense working length
    Mp = _round_up(HW, 128)                # lane-dense fc_o output length
    E = P * Wp + P                         # largest |tap shift| on the flat axis
    Lext = Lz + 2 * E                      # extended flat length fed to the kernel

    # --- x: spatial zero-pad, flatten, extend along the flat axis, append a
    #     constant-one channel (folds the conv bias into the conv matmul).
    xpad = jnp.pad(x, ((0, 0), (0, 0), (P, P), (P, P))).reshape(B, C, Lq)
    xext = jnp.pad(xpad, ((0, 0), (0, 0), (E, Lext - Lq - E)))
    x_aug = jnp.concatenate(
        [xext, jnp.ones((B, 1, Lext), xext.dtype)], axis=1).astype(jnp.bfloat16)

    # --- conv weights: one (C, C+1) matrix per tap; the extra column carries
    #     the bias (attached to tap 0, which pairs with the ones channel).
    wk = jnp.transpose(w_conv, (2, 3, 0, 1)).reshape(K * K, C, C)
    bias_col = jnp.zeros((K * K, C, 1), w_conv.dtype).at[0, :, 0].set(b_conv)
    wk_aug = jnp.concatenate([wk, bias_col], axis=2).astype(jnp.bfloat16)

    # --- interior mask over the (lane-padded) flattened padded grid.
    q = jnp.arange(Lz)
    ip, jp = q // Wp, q % Wp
    mask = ((q < Lq) & (ip >= P) & (ip < P + H) & (jp >= P) & (jp < P + W))
    mask = mask.astype(jnp.float32).reshape(1, Lz)

    # --- fc_o weight scattered onto the padded-grid rows, lane-padded, bf16.
    woT = w_o.T.reshape(H, W, HW)                                   # (in -> out)
    woT = jnp.pad(woT, ((P, P), (P, P), (0, 0))).reshape(Lq, HW)
    woT = jnp.pad(woT, ((0, Lz - Lq), (0, Mp - HW))).astype(jnp.bfloat16)
    bo = jnp.pad(b_o, (0, Mp - HW)).reshape(1, Mp).astype(jnp.float32)

    # fc_o output tiling (keeps the big weight out of VMEM as one block).
    if Mp % 512 == 0:
        tile_n = 512
    elif Mp % 256 == 0:
        tile_n = 256
    else:
        tile_n = 128
    n_tiles = Mp // tile_n

    kernel = functools.partial(_channel_attn_kernel, K=K, Wp=Wp, Lz=Lz,
                               scale=1.0 / math.sqrt(HW))

    grid_spec = pltpu.PrefetchScalarGridSpec(
        num_scalar_prefetch=0,
        grid=(B, n_tiles),
        in_specs=[
            pl.BlockSpec((1, C + 1, Lext), lambda b, j: (b, 0, 0)),    # x tile (per batch)
            pl.BlockSpec((K * K, C, C + 1), lambda b, j: (0, 0, 0)),   # conv taps (+bias)
            pl.BlockSpec((1, Lz), lambda b, j: (0, 0)),                # interior mask
            pl.BlockSpec((Lz, tile_n), lambda b, j: (0, j)),           # fc_o weight tile
            pl.BlockSpec((1, tile_n), lambda b, j: (0, j)),            # fc_o bias tile
        ],
        out_specs=pl.BlockSpec((1, C, tile_n), lambda b, j: (b, 0, j)),
        scratch_shapes=[pltpu.VMEM((C, Lz), jnp.bfloat16)],            # att @ y, resident
    )

    out = pl.pallas_call(
        kernel,
        out_shape=jax.ShapeDtypeStruct((B, C, Mp), x.dtype),
        grid_spec=grid_spec,
        compiler_params=pltpu.CompilerParams(
            dimension_semantics=("parallel", "arbitrary"),
            vmem_limit_bytes=48 * 1024 * 1024),
    )(x_aug, wk_aug, mask, woT, bo)

    return out[:, :, :HW] if Mp != HW else out


def _reference(x, w_conv, b_conv, w_o, b_o):
    """Pure-JAX reference matching the PyTorch forward (eval mode)."""
    B, C, H, W = x.shape
    y = jax.lax.conv_general_dilated(
        x, w_conv, window_strides=(1, 1), padding="SAME",
        dimension_numbers=("NCHW", "OIHW", "NCHW"))
    y = y + b_conv.reshape(1, C, 1, 1)
    y = y.reshape(B, C, H * W)
    att = jnp.einsum("bcd,bed->bce", y, y) / jnp.sqrt(float(H * W))
    att = jax.nn.softmax(att, axis=-1)
    out = jnp.einsum("bce,bed->bcd", att, y)
    return out @ w_o.T + b_o


if __name__ == "__main__":
    # Small, shape-consistent config: d_model (=channels) = 8, H = W = 4 -> HW = 16.
    B, C, H, W = 2, 8, 4, 4
    K = 3

    key = jax.random.PRNGKey(0)
    kx, kw, kb, kwo, kbo = jax.random.split(key, 5)
    x = jax.random.normal(kx, (B, C, H, W), jnp.float32)
    w_conv = 0.1 * jax.random.normal(kw, (C, C, K, K), jnp.float32)   # Conv2d weight
    b_conv = 0.1 * jax.random.normal(kb, (C,), jnp.float32)           # Conv2d bias
    w_o = 0.1 * jax.random.normal(kwo, (H * W, H * W), jnp.float32)   # fc_o weight
    b_o = 0.1 * jax.random.normal(kbo, (H * W,), jnp.float32)         # fc_o bias

    out = channel_attention_forward(x, w_conv, b_conv, w_o, b_o, kernel_size=K)
    out = jax.block_until_ready(out)

    ref = _reference(x, w_conv, b_conv, w_o, b_o)
    assert out.shape == (B, C, H * W), out.shape
    max_err = float(jnp.max(jnp.abs(out - ref)))
    # bf16 MXU operands + approx reciprocal -> loose-but-safe tolerance vs f32 reference.
    assert jnp.allclose(out, ref, atol=5e-2, rtol=5e-2), max_err

    print("KERNEL_OK")
</pallas_src>

<mosaic_0001>
module attributes {stable_mosaic.version = 11 : i64} {
  func.func @_channel_attn_kernel(%arg0: i32, %arg1: i32, %arg2: memref<1x9x142xbf16, #tpu.memory_space<vmem>>, %arg3: memref<9x8x9xbf16, #tpu.memory_space<vmem>>, %arg4: memref<1x128xf32, #tpu.memory_space<vmem>>, %arg5: memref<128x128xbf16, #tpu.memory_space<vmem>>, %arg6: memref<1x128xf32, #tpu.memory_space<vmem>>, %arg7: memref<1x8x128xf32, #tpu.memory_space<vmem>>, %arg8: memref<8x128xbf16, #tpu.memory_space<vmem>>) attributes {dimension_semantics = [#tpu.dimension_semantics<parallel>, #tpu.dimension_semantics<arbitrary>], iteration_bounds = array<i64: 2, 1>, scalar_prefetch = 0 : i64, scratch_operands = 1 : i64, tpu.core_type = #tpu.core_type<tc>, window_params = [{transform_indices = @transform_0, window_bounds = array<i64: 1, 9, 142>}, {pipeline_mode = #tpu.pipeline_mode<synchronous>, transform_indices = @transform_1, window_bounds = array<i64: 9, 8, 9>}, {pipeline_mode = #tpu.pipeline_mode<synchronous>, transform_indices = @transform_2, window_bounds = array<i64: 1, 128>}, {transform_indices = @transform_3, window_bounds = array<i64: 128, 128>}, {transform_indices = @transform_4, window_bounds = array<i64: 1, 128>}, {transform_indices = @transform_5, window_bounds = array<i64: 1, 8, 128>}]} {
    %c0_i32 = arith.constant 0 : i32
    %0 = arith.cmpi eq, %arg1, %c0_i32 : i32
    %1 = arith.extui %0 : i1 to i32
    %c0_i32_0 = arith.constant 0 : i32
    %2 = arith.cmpi ne, %1, %c0_i32_0 : i32
    scf.if %2 {
      %cst_9 = arith.constant 0.000000e+00 : f32
      %12 = vector.broadcast %cst_9 : f32 to vector<8x128xf32>
      %c0_10 = arith.constant 0 : index
      %c0_11 = arith.constant 0 : index
      %c0_12 = arith.constant 0 : index
      %13 = vector.load %arg2[%c0_10, %c0_11, %c0_12] : memref<1x9x142xbf16, #tpu.memory_space<vmem>>, vector<1x9x128xbf16>
      %14 = vector.shape_cast %13 : vector<1x9x128xbf16> to vector<9x128xbf16>
      %c0_13 = arith.constant 0 : index
      %c0_14 = arith.constant 0 : index
      %c0_15 = arith.constant 0 : index
      %15 = vector.load %arg3[%c0_13, %c0_14, %c0_15] : memref<9x8x9xbf16, #tpu.memory_space<vmem>>, vector<1x8x9xbf16>
      %16 = vector.shape_cast %15 : vector<1x8x9xbf16> to vector<8x9xbf16>
      %cst_16 = arith.constant dense<0.000000e+00> : vector<8x128xf32>
      %17 = tpu.matmul %16, %14, %cst_16 {dimension_numbers = #tpu.dot_dimension_numbers<[1], [0], [0], [1], [0, 0, 1, 1], [], []>} : vector<8x9xbf16>, vector<9x128xbf16>, vector<8x128xf32> -> vector<8x128xf32>
      %18 = arith.addf %12, %17 : vector<8x128xf32>
      %c0_17 = arith.constant 0 : index
      %c0_18 = arith.constant 0 : index
      %c1 = arith.constant 1 : index
      %19 = vector.load %arg2[%c0_17, %c0_18, %c1] : memref<1x9x142xbf16, #tpu.memory_space<vmem>>, vector<1x9x128xbf16>
      %20 = vector.shape_cast %19 : vector<1x9x128xbf16> to vector<9x128xbf16>
      %c1_19 = arith.constant 1 : index
      %c0_20 = arith.constant 0 : index
      %c0_21 = arith.constant 0 : index
      %21 = vector.load %arg3[%c1_19, %c0_20, %c0_21] : memref<9x8x9xbf16, #tpu.memory_space<vmem>>, vector<1x8x9xbf16>
      %22 = vector.shape_cast %21 : vector<1x8x9xbf16> to vector<8x9xbf16>
      %cst_22 = arith.constant dense<0.000000e+00> : vector<8x128xf32>
      %23 = tpu.matmul %22, %20, %cst_22 {dimension_numbers = #tpu.dot_dimension_numbers<[1], [0], [0], [1], [0, 0, 1, 1], [], []>} : vector<8x9xbf16>, vector<9x128xbf16>, vector<8x128xf32> -> vector<8x128xf32>
      %24 = arith.addf %18, %23 : vector<8x128xf32>
      %c0_23 = arith.constant 0 : index
      %c0_24 = arith.constant 0 : index
      %c2 = arith.constant 2 : index
      %25 = vector.load %arg2[%c0_23, %c0_24, %c2] : memref<1x9x142xbf16, #tpu.memory_space<vmem>>, vector<1x9x128xbf16>
      %26 = vector.shape_cast %25 : vector<1x9x128xbf16> to vector<9x128xbf16>
      %c2_25 = arith.constant 2 : index
      %c0_26 = arith.constant 0 : index
      %c0_27 = arith.constant 0 : index
      %27 = vector.load %arg3[%c2_25, %c0_26, %c0_27] : memref<9x8x9xbf16, #tpu.memory_space<vmem>>, vector<1x8x9xbf16>
      %28 = vector.shape_cast %27 : vector<1x8x9xbf16> to vector<8x9xbf16>
      %cst_28 = arith.constant dense<0.000000e+00> : vector<8x128xf32>
      %29 = tpu.matmul %28, %26, %cst_28 {dimension_numbers = #tpu.dot_dimension_numbers<[1], [0], [0], [1], [0, 0, 1, 1], [], []>} : vector<8x9xbf16>, vector<9x128xbf16>, vector<8x128xf32> -> vector<8x128xf32>
      %30 = arith.addf %24, %29 : vector<8x128xf32>
      %c0_29 = arith.constant 0 : index
      %c0_30 = arith.constant 0 : index
      %c6 = arith.constant 6 : index
      %31 = vector.load %arg2[%c0_29, %c0_30, %c6] : memref<1x9x142xbf16, #tpu.memory_space<vmem>>, vector<1x9x128xbf16>
      %32 = vector.shape_cast %31 : vector<1x9x128xbf16> to vector<9x128xbf16>
      %c3 = arith.constant 3 : index
      %c0_31 = arith.constant 0 : index
      %c0_32 = arith.constant 0 : index
      %33 = vector.load %arg3[%c3, %c0_31, %c0_32] : memref<9x8x9xbf16, #tpu.memory_space<vmem>>, vector<1x8x9xbf16>
      %34 = vector.shape_cast %33 : vector<1x8x9xbf16> to vector<8x9xbf16>
      %cst_33 = arith.constant dense<0.000000e+00> : vector<8x128xf32>
      %35 = tpu.matmul %34, %32, %cst_33 {dimension_numbers = #tpu.dot_dimension_numbers<[1], [0], [0], [1], [0, 0, 1, 1], [], []>} : vector<8x9xbf16>, vector<9x128xbf16>, vector<8x128xf32> -> vector<8x128xf32>
      %36 = arith.addf %30, %35 : vector<8x128xf32>
      %c0_34 = arith.constant 0 : index
      %c0_35 = arith.constant 0 : index
      %c7 = arith.constant 7 : index
      %37 = vector.load %arg2[%c0_34, %c0_35, %c7] : memref<1x9x142xbf16, #tpu.memory_space<vmem>>, vector<1x9x128xbf16>
      %38 = vector.shape_cast %37 : vector<1x9x128xbf16> to vector<9x128xbf16>
      %c4 = arith.constant 4 : index
      %c0_36 = arith.constant 0 : index
      %c0_37 = arith.constant 0 : index
      %39 = vector.load %arg3[%c4, %c0_36, %c0_37] : memref<9x8x9xbf16, #tpu.memory_space<vmem>>, vector<1x8x9xbf16>
      %40 = vector.shape_cast %39 : vector<1x8x9xbf16> to vector<8x9xbf16>
      %cst_38 = arith.constant dense<0.000000e+00> : vector<8x128xf32>
      %41 = tpu.matmul %40, %38, %cst_38 {dimension_numbers = #tpu.dot_dimension_numbers<[1], [0], [0], [1], [0, 0, 1, 1], [], []>} : vector<8x9xbf16>, vector<9x128xbf16>, vector<8x128xf32> -> vector<8x128xf32>
      %42 = arith.addf %36, %41 : vector<8x128xf32>
      %c0_39 = arith.constant 0 : index
      %c0_40 = arith.constant 0 : index
      %c8 = arith.constant 8 : index
      %43 = vector.load %arg2[%c0_39, %c0_40, %c8] : memref<1x9x142xbf16, #tpu.memory_space<vmem>>, vector<1x9x128xbf16>
      %44 = vector.shape_cast %43 : vector<1x9x128xbf16> to vector<9x128xbf16>
      %c5 = arith.constant 5 : index
      %c0_41 = arith.constant 0 : index
      %c0_42 = arith.constant 0 : index
      %45 = vector.load %arg3[%c5, %c0_41, %c0_42] : memref<9x8x9xbf16, #tpu.memory_space<vmem>>, vector<1x8x9xbf16>
      %46 = vector.shape_cast %45 : vector<1x8x9xbf16> to vector<8x9xbf16>
      %cst_43 = arith.constant dense<0.000000e+00> : vector<8x128xf32>
      %47 = tpu.matmul %46, %44, %cst_43 {dimension_numbers = #tpu.dot_dimension_numbers<[1], [0], [0], [1], [0, 0, 1, 1], [], []>} : vector<8x9xbf16>, vector<9x128xbf16>, vector<8x128xf32> -> vector<8x128xf32>
      %48 = arith.addf %42, %47 : vector<8x128xf32>
      %c0_44 = arith.constant 0 : index
      %c0_45 = arith.constant 0 : index
      %c12 = arith.constant 12 : index
      %49 = vector.load %arg2[%c0_44, %c0_45, %c12] : memref<1x9x142xbf16, #tpu.memory_space<vmem>>, vector<1x9x128xbf16>
      %50 = vector.shape_cast %49 : vector<1x9x128xbf16> to vector<9x128xbf16>
      %c6_46 = arith.constant 6 : index
      %c0_47 = arith.constant 0 : index
      %c0_48 = arith.constant 0 : index
      %51 = vector.load %arg3[%c6_46, %c0_47, %c0_48] : memref<9x8x9xbf16, #tpu.memory_space<vmem>>, vector<1x8x9xbf16>
      %52 = vector.shape_cast %51 : vector<1x8x9xbf16> to vector<8x9xbf16>
      %cst_49 = arith.constant dense<0.000000e+00> : vector<8x128xf32>
      %53 = tpu.matmul %52, %50, %cst_49 {dimension_numbers = #tpu.dot_dimension_numbers<[1], [0], [0], [1], [0, 0, 1, 1], [], []>} : vector<8x9xbf16>, vector<9x128xbf16>, vector<8x128xf32> -> vector<8x128xf32>
      %54 = arith.addf %48, %53 : vector<8x128xf32>
      %c0_50 = arith.constant 0 : index
      %c0_51 = arith.constant 0 : index
      %c13 = arith.constant 13 : index
      %55 = vector.load %arg2[%c0_50, %c0_51, %c13] : memref<1x9x142xbf16, #tpu.memory_space<vmem>>, vector<1x9x128xbf16>
      %56 = vector.shape_cast %55 : vector<1x9x128xbf16> to vector<9x128xbf16>
      %c7_52 = arith.constant 7 : index
      %c0_53 = arith.constant 0 : index
      %c0_54 = arith.constant 0 : index
      %57 = vector.load %arg3[%c7_52, %c0_53, %c0_54] : memref<9x8x9xbf16, #tpu.memory_space<vmem>>, vector<1x8x9xbf16>
      %58 = vector.shape_cast %57 : vector<1x8x9xbf16> to vector<8x9xbf16>
      %cst_55 = arith.constant dense<0.000000e+00> : vector<8x128xf32>
      %59 = tpu.matmul %58, %56, %cst_55 {dimension_numbers = #tpu.dot_dimension_numbers<[1], [0], [0], [1], [0, 0, 1, 1], [], []>} : vector<8x9xbf16>, vector<9x128xbf16>, vector<8x128xf32> -> vector<8x128xf32>
      %60 = arith.addf %54, %59 : vector<8x128xf32>
      %c0_56 = arith.constant 0 : index
      %c0_57 = arith.constant 0 : index
      %c14 = arith.constant 14 : index
      %61 = vector.load %arg2[%c0_56, %c0_57, %c14] : memref<1x9x142xbf16, #tpu.memory_space<vmem>>, vector<1x9x128xbf16>
      %62 = vector.shape_cast %61 : vector<1x9x128xbf16> to vector<9x128xbf16>
      %c8_58 = arith.constant 8 : index
      %c0_59 = arith.constant 0 : index
      %c0_60 = arith.constant 0 : index
      %63 = vector.load %arg3[%c8_58, %c0_59, %c0_60] : memref<9x8x9xbf16, #tpu.memory_space<vmem>>, vector<1x8x9xbf16>
      %64 = vector.shape_cast %63 : vector<1x8x9xbf16> to vector<8x9xbf16>
      %cst_61 = arith.constant dense<0.000000e+00> : vector<8x128xf32>
      %65 = tpu.matmul %64, %62, %cst_61 {dimension_numbers = #tpu.dot_dimension_numbers<[1], [0], [0], [1], [0, 0, 1, 1], [], []>} : vector<8x9xbf16>, vector<9x128xbf16>, vector<8x128xf32> -> vector<8x128xf32>
      %66 = arith.addf %60, %65 : vector<8x128xf32>
      %c0_62 = arith.constant 0 : index
      %c0_63 = arith.constant 0 : index
      %67 = vector.load %arg4[%c0_62, %c0_63] : memref<1x128xf32, #tpu.memory_space<vmem>>, vector<1x128xf32>
      %68 = vector.broadcast %67 : vector<1x128xf32> to vector<8x128xf32>
      %69 = arith.mulf %66, %68 : vector<8x128xf32>
      %70 = arith.truncf %69 : vector<8x128xf32> to vector<8x128xbf16>
      %cst_64 = arith.constant dense<0.000000e+00> : vector<8x8xf32>
      %71 = tpu.matmul %70, %70, %cst_64 {dimension_numbers = #tpu.dot_dimension_numbers<[1], [1], [0], [0], [0, 0, 1, 0], [], []>} : vector<8x128xbf16>, vector<8x128xbf16>, vector<8x8xf32> -> vector<8x8xf32>
      %cst_65 = arith.constant 2.500000e-01 : f32
      %72 = vector.broadcast %cst_65 : f32 to vector<8x8xf32>
      %73 = arith.mulf %71, %72 : vector<8x8xf32>
      %cst_66 = arith.constant dense<0xFF800000> : vector<8xf32>
      %74 = vector.multi_reduction <maximumf>, %73, %cst_66 [1] : vector<8x8xf32> to vector<8xf32>
      %75 = vector.shape_cast %74 : vector<8xf32> to vector<8x1xf32>
      %76 = vector.broadcast %75 : vector<8x1xf32> to vector<8x8xf32>
      %77 = arith.subf %73, %76 : vector<8x8xf32>
      %78 = math.exp %77 : vector<8x8xf32>
      %cst_67 = arith.constant dense<0.000000e+00> : vector<8xf32>
      %79 = vector.multi_reduction <add>, %78, %cst_67 [1] : vector<8x8xf32> to vector<8xf32>
      %80 = vector.shape_cast %79 : vector<8xf32> to vector<8x1xf32>
      %81 = tpu.reciprocal %80 {approx = true} : vector<8x1xf32> -> vector<8x1xf32>
      %82 = vector.broadcast %81 : vector<8x1xf32> to vector<8x8xf32>
      %83 = arith.mulf %78, %82 : vector<8x8xf32>
      %84 = arith.truncf %83 : vector<8x8xf32> to vector<8x8xbf16>
      %cst_68 = arith.constant dense<0.000000e+00> : vector<8x128xf32>
      %85 = tpu.matmul %84, %70, %cst_68 {dimension_numbers = #tpu.dot_dimension_numbers<[1], [0], [0], [1], [0, 0, 1, 1], [], []>} : vector<8x8xbf16>, vector<8x128xbf16>, vector<8x128xf32> -> vector<8x128xf32>
      %86 = arith.truncf %85 : vector<8x128xf32> to vector<8x128xbf16>
      %c0_69 = arith.constant 0 : index
      %c0_70 = arith.constant 0 : index
      %87 = vector.load %arg8[%c0_69, %c0_70] : memref<8x128xbf16, #tpu.memory_space<vmem>>, vector<8x128xbf16>
      tpu.vector_store %arg8[%c0_69, %c0_70], %86 {strides = array<i32>} : memref<8x128xbf16, #tpu.memory_space<vmem>>, vector<8x128xbf16>,
    } else {
    }
    %c0 = arith.constant 0 : index
    %c0_1 = arith.constant 0 : index
    %3 = vector.load %arg8[%c0, %c0_1] : memref<8x128xbf16, #tpu.memory_space<vmem>>, vector<8x128xbf16>
    %c0_2 = arith.constant 0 : index
    %c0_3 = arith.constant 0 : index
    %4 = vector.load %arg5[%c0_2, %c0_3] : memref<128x128xbf16, #tpu.memory_space<vmem>>, vector<128x128xbf16>
    %cst = arith.constant dense<0.000000e+00> : vector<8x128xf32>
    %5 = tpu.matmul %3, %4, %cst {dimension_numbers = #tpu.dot_dimension_numbers<[1], [0], [0], [1], [0, 0, 1, 1], [], []>} : vector<8x128xbf16>, vector<128x128xbf16>, vector<8x128xf32> -> vector<8x128xf32>
    %c0_4 = arith.constant 0 : index
    %c0_5 = arith.constant 0 : index
    %6 = vector.load %arg6[%c0_4, %c0_5] : memref<1x128xf32, #tpu.memory_space<vmem>>, vector<1x128xf32>
    %7 = vector.broadcast %6 : vector<1x128xf32> to vector<8x128xf32>
    %8 = arith.addf %5, %7 : vector<8x128xf32>
    %c0_6 = arith.constant 0 : index
    %c0_7 = arith.constant 0 : index
    %c0_8 = arith.constant 0 : index
    %9 = vector.load %arg7[%c0_6, %c0_7, %c0_8] : memref<1x8x128xf32, #tpu.memory_space<vmem>>, vector<1x8x128xf32>
    %10 = vector.shape_cast %9 : vector<1x8x128xf32> to vector<8x128xf32>
    %11 = vector.shape_cast %8 : vector<8x128xf32> to vector<1x8x128xf32>
    tpu.vector_store %arg7[%c0_6, %c0_7, %c0_8], %11 {strides = array<i32>} : memref<1x8x128xf32, #tpu.memory_space<vmem>>, vector<1x8x128xf32>,
    return
  }
  func.func @transform_0(%arg0: i32, %arg1: i32) -> (i32, i32, i32) {
    %c0_i32 = arith.constant 0 : i32
    %c0_i32_0 = arith.constant 0 : i32
    %c0_i32_1 = arith.constant 0 : i32
    return %arg0, %c0_i32, %c0_i32_0 : i32, i32, i32
  }
  func.func @transform_1(%arg0: i32, %arg1: i32) -> (i32, i32, i32) {
    %c0_i32 = arith.constant 0 : i32
    %c0_i32_0 = arith.constant 0 : i32
    %c0_i32_1 = arith.constant 0 : i32
    %c0_i32_2 = arith.constant 0 : i32
    return %c0_i32, %c0_i32_0, %c0_i32_1 : i32, i32, i32
  }
  func.func @transform_2(%arg0: i32, %arg1: i32) -> (i32, i32) {
    %c0_i32 = arith.constant 0 : i32
    %c0_i32_0 = arith.constant 0 : i32
    %c0_i32_1 = arith.constant 0 : i32
    return %c0_i32, %c0_i32_0 : i32, i32
  }
  func.func @transform_3(%arg0: i32, %arg1: i32) -> (i32, i32) {
    %c0_i32 = arith.constant 0 : i32
    %c0_i32_0 = arith.constant 0 : i32
    return %c0_i32, %arg1 : i32, i32
  }
  func.func @transform_4(%arg0: i32, %arg1: i32) -> (i32, i32) {
    %c0_i32 = arith.constant 0 : i32
    %c0_i32_0 = arith.constant 0 : i32
    return %c0_i32, %arg1 : i32, i32
  }
  func.func @transform_5(%arg0: i32, %arg1: i32) -> (i32, i32, i32) {
    %c0_i32 = arith.constant 0 : i32
    %c0_i32_0 = arith.constant 0 : i32
    return %arg0, %c0_i32, %arg1 : i32, i32, i32
  }
}

</mosaic_0001>

<llo_original>
// kernel: tpu_custom_call.1
$region0: #{tpu_custom_call.1}
  #allocation0 [shape = 'u32[]', space=smem, size = 0x4, offset = 0x4, fixed_abs, tag = 'smem constant byte address 0x4 - core index']
  #allocation1 [shape = 'u32[144,128]{1,0:T(1,128)}', space=vmem, size = 0x12000, scoped, tag = 'internal scratch']
  #allocation2 [shape = 'bf16[8,128]{1,0:T(8,128)(2,1)}', space=vmem, size = 0x800, scoped, tag = 'scratch operand']
  %s0 = inlined_call_operand.vmem [shape: bf16[2,9,142], index: 0, kind: input, shape index: {}]
  %s1 = inlined_call_operand.vmem [shape: bf16[9,8,9], index: 1, kind: input, shape index: {}]
  %s2 = inlined_call_operand.vmem [shape: f32[1,128], index: 2, kind: input, shape index: {}]
  %s3 = inlined_call_operand.hbm [shape: bf16[128,128], index: 3, kind: input, shape index: {}]
  %s4 = inlined_call_operand.vmem [shape: f32[1,128], index: 4, kind: input, shape index: {}]
  %s5 = inlined_call_operand.hbm [shape: f32[2,8,128], index: 5, kind: output, shape index: {}]
  %s6 = sld [smem:[#allocation0]]
  $region61: #{tpu_custom_call.1} parent=0
    _
  %s8 = ssub.s32 1, %s6
  %s9 = scalar_select 0, %s8, %s6
  $region1: #{tpu_custom_call.1} parent=0
    #allocation3 [shape = 'u8[32768]{0}', space=vmem, size = 0x8000, scoped, tag = 'input window, operand 3, single buffered']
    #allocation4 [shape = 's32[2]{0}', space=sflag, size = 0x8, scoped, tag = 'scoped memory for tpu_custom_call.1']
    #allocation5 [shape = 's32[2]{0}', space=sflag, size = 0x8, scoped, tag = 'scoped memory for tpu_custom_call.1']
    #allocation6 [shape = 'u8[8192]{0}', space=vmem, size = 0x2000, scoped, tag = 'output window, operand 0']
    %10 = vsyncpa [#allocation4], 0
    %11 = vsyncpa [#allocation5], 0
    %s12 = scalar_lea.sflag [#allocation5], 1
    %13 = vsyncpa %s12, 0
    loop: start=0, step=1, limit=4
    $region2: #{tpu_custom_call.1} parent=1 // loop_pre_header
      _
    $region3: #{tpu_custom_call.1} parent=1 // loop_header
      %s15 = sphi 0, %s19
      %p16 = scmp.ge.s32.totalorder %s15, 4
      %s22 = sphi 0, %s34
      %s23 = sphi 0, %s30
      %s24 = sphi 0, %s22
      %s25 = sphi 0, %s23
      %s26 = sphi 0, %s24
      %s27 = sphi 0, %s25
      %s37 = sphi 0, %s39
      %s40 = sphi 0, %s37
      %s41 = sphi 0, %s40
      %s57 = sphi 0, %s41
      %s61 = sphi 0, %s61
      %s63 = sphi 0, %s61
      %s64 = sphi 0, %s63
      %s78 = sphi 0, %s64
      %s82 = sphi 0, %s82
      %s84 = sphi 0, %s82
      %s85 = sphi 0, %s84
      %s99 = sphi 0, %s85
      %s105 = sphi 0, %s107
      %s108 = sphi 0, %s105
      %s109 = sphi 0, %s108
      %s125 = sphi 0, %s109
      %s131 = sphi 0, %s133
      %s134 = sphi 0, %s131
      %s135 = sphi 0, %s134
      %s151 = sphi 0, %s135
      %s159 = sphi 0, %s161
      %s162 = sphi 0, %s159
      %s163 = sphi 0, %s162
      %s179 = sphi 0, %s163
    $region4: #{tpu_custom_call.1} parent=1 // loop_header_branch
      %18 = sbr.rel (%p16) target = $region8
    $region5: #{tpu_custom_call.1} parent=1 // loop_body
      %s20 = ssub.s32 %s15, 1
      %s21 = ssub.s32 %s15, 2
      %s28 = sadd.s32 1, %s23
      %p29 = scmp.ge.s32.totalorder %s28, 1
      %s30 = scalar_select %p29, 0, %s28
      %s31 = sadd.s32 1, %s22
      %s32 = scalar_select %p29, %s31, %s22
      %p33 = scmp.ge.s32.totalorder %s32, 2
      %s34 = scalar_select %p33, 0, %s32
      %s35 = ssub.s32 %s22, %s34
      %p36 = scmp.eq.s32.totalorder %s35, 0
      %s38 = sadd.s32 %s37, 1
      %s39 = scalar_select %p36, %s37, %s38
      %p42 = pneg %p36
      %p43 = scmp.eq.s32.totalorder %s15, 1
      %p44 = por %p42, %p43
      %p45 = scmp.ne.s32.totalorder %s37, %s40
      %p46 = scmp.eq.s32.totalorder %s15, 0
      %p47 = por %p45, %p46
      %p48 = scmp.ne.s32.totalorder %s37, %s40
      %p49 = scmp.eq.s32.totalorder %s20, 1
      %p50 = por %p48, %p49
      %p51 = scmp.ne.s32.totalorder %s40, %s41
      %p52 = scmp.eq.s32.totalorder %s20, 0
      %p53 = por %p51, %p52
      %p54 = scmp.ne.s32.totalorder %s40, %s41
      %p55 = scmp.eq.s32.totalorder %s21, 1
      %p56 = por %p54, %p55
      %p58 = scmp.ne.s32.totalorder %s41, %s57
      %p59 = scmp.eq.s32.totalorder %s21, 0
      %p60 = por %p58, %p59
      %s62 = sadd.s32 %s61, 1
      %p65 = scmp.eq.s32.totalorder %s15, 1
      %p66 = scmp.ne.s32.totalorder %s61, %s63
      %p67 = scmp.eq.s32.totalorder %s15, 0
      %p68 = por %p66, %p67
      %p69 = scmp.ne.s32.totalorder %s61, %s63
      %p70 = scmp.eq.s32.totalorder %s20, 1
      %p71 = por %p69, %p70
      %p72 = scmp.ne.s32.totalorder %s63, %s64
      %p73 = scmp.eq.s32.totalorder %s20, 0
      %p74 = por %p72, %p73
      %p75 = scmp.ne.s32.totalorder %s63, %s64
      %p76 = scmp.eq.s32.totalorder %s21, 1
      %p77 = por %p75, %p76
      %p79 = scmp.ne.s32.totalorder %s64, %s78
      %p80 = scmp.eq.s32.totalorder %s21, 0
      %p81 = por %p79, %p80
      %s83 = sadd.s32 %s82, 1
      %p86 = scmp.eq.s32.totalorder %s15, 1
      %p87 = scmp.ne.s32.totalorder %s82, %s84
      %p88 = scmp.eq.s32.totalorder %s15, 0
      %p89 = por %p87, %p88
      %p90 = scmp.ne.s32.totalorder %s82, %s84
      %p91 = scmp.eq.s32.totalorder %s20, 1
      %p92 = por %p90, %p91
      %p93 = scmp.ne.s32.totalorder %s84, %s85
      %p94 = scmp.eq.s32.totalorder %s20, 0
      %p95 = por %p93, %p94
      %p96 = scmp.ne.s32.totalorder %s84, %s85
      %p97 = scmp.eq.s32.totalorder %s21, 1
      %p98 = por %p96, %p97
      %p100 = scmp.ne.s32.totalorder %s85, %s99
      %p101 = scmp.eq.s32.totalorder %s21, 0
      %p102 = por %p100, %p101
      %s103 = ssub.s32 %s23, %s30
      %p104 = scmp.eq.s32.totalorder %s103, 0
      %s106 = sadd.s32 %s105, 1
      %s107 = scalar_select %p104, %s105, %s106
      %p110 = pneg %p104
      %p111 = scmp.eq.s32.totalorder %s15, 1
      %p112 = por %p110, %p111
      %p113 = scmp.ne.s32.totalorder %s105, %s108
      %p114 = scmp.eq.s32.totalorder %s15, 0
      %p115 = por %p113, %p114
      %p116 = scmp.ne.s32.totalorder %s105, %s108
      %p117 = scmp.eq.s32.totalorder %s20, 1
      %p118 = por %p116, %p117
      %p119 = scmp.ne.s32.totalorder %s108, %s109
      %p120 = scmp.eq.s32.totalorder %s20, 0
      %p121 = por %p119, %p120
      %p122 = scmp.ne.s32.totalorder %s108, %s109
      %p123 = scmp.eq.s32.totalorder %s21, 1
      %p124 = por %p122, %p123
      %p126 = scmp.ne.s32.totalorder %s109, %s125
      %p127 = scmp.eq.s32.totalorder %s21, 0
      %p128 = por %p126, %p127
      %s129 = ssub.s32 %s23, %s30
      %p130 = scmp.eq.s32.totalorder %s129, 0
      %s132 = sadd.s32 %s131, 1
      %s133 = scalar_select %p130, %s131, %s132
      %p136 = pneg %p130
      %p137 = scmp.eq.s32.totalorder %s15, 1
      %p138 = por %p136, %p137
      %p139 = scmp.ne.s32.totalorder %s131, %s134
      %p140 = scmp.eq.s32.totalorder %s15, 0
      %p141 = por %p139, %p140
      %p142 = scmp.ne.s32.totalorder %s131, %s134
      %p143 = scmp.eq.s32.totalorder %s20, 1
      %p144 = por %p142, %p143
      %p145 = scmp.ne.s32.totalorder %s134, %s135
      %p146 = scmp.eq.s32.totalorder %s20, 0
      %p147 = por %p145, %p146
      %p148 = scmp.ne.s32.totalorder %s134, %s135
      %p149 = scmp.eq.s32.totalorder %s21, 1
      %p150 = por %p148, %p149
      %p152 = scmp.ne.s32.totalorder %s135, %s151
      %p153 = scmp.eq.s32.totalorder %s21, 0
      %p154 = por %p152, %p153
      %s155 = ssub.s32 %s22, %s34
      %s156 = ssub.s32 %s23, %s30
      %s157 = sor.u32 %s155, %s156
      %p158 = scmp.eq.s32.totalorder %s157, 0
      %s160 = sadd.s32 %s159, 1
      %s161 = scalar_select %p158, %s159, %s160
      %p164 = pneg %p158
      %p165 = scmp.eq.s32.totalorder %s15, 1
      %p166 = por %p164, %p165
      %p167 = scmp.ne.s32.totalorder %s159, %s162
      %p168 = scmp.eq.s32.totalorder %s15, 0
      %p169 = por %p167, %p168
      %p170 = scmp.ne.s32.totalorder %s159, %s162
      %p171 = scmp.eq.s32.totalorder %s20, 1
      %p172 = por %p170, %p171
      %p173 = scmp.ne.s32.totalorder %s162, %s163
      %p174 = scmp.eq.s32.totalorder %s20, 0
      %p175 = por %p173, %p174
      %p176 = scmp.ne.s32.totalorder %s162, %s163
      %p177 = scmp.eq.s32.totalorder %s21, 1
      %p178 = por %p176, %p177
      %p180 = scmp.ne.s32.totalorder %s163, %s179
      %p181 = scmp.eq.s32.totalorder %s21, 0
      %p182 = por %p180, %p181
      %p183 = scmp.le.s32.totalorder 1, %s15
      %p184 = scmp.lt.s32.totalorder %s15, 3
      %p185 = pnand %p183, %p184
      %p186 = pneg %p185
      // Predicated region
      $region9: #{tpu_custom_call.1} parent=5 // pred_check
        _
      $region10: #{tpu_custom_call.1} parent=5 // pred_check_branch
        %188 = sbr.rel (%p185) target = $region12
      $region11: #{tpu_custom_call.1} parent=5 // pred_region
        %s189 = ssub.s32 %s15, 1
        // Predicated region
        $region13: #{tpu_custom_call.1} parent=11 // pred_check
          %p190 = pneg %p74
        $region14: #{tpu_custom_call.1} parent=11 // pred_check_branch
          %192 = sbr.rel (%p190) target = $region16
        $region15: #{tpu_custom_call.1} parent=11 // pred_region
          _
        $region16: #{tpu_custom_call.1} parent=11 // pred_fallthru
          _
        // Predicated region
        $region17: #{tpu_custom_call.1} parent=11 // pred_check
          %p193 = pneg %p95
        $region18: #{tpu_custom_call.1} parent=11 // pred_check_branch
          %195 = sbr.rel (%p193) target = $region20
        $region19: #{tpu_custom_call.1} parent=11 // pred_region
          _
        $region20: #{tpu_custom_call.1} parent=11 // pred_fallthru
          _
        // Predicated region
        $region21: #{tpu_custom_call.1} parent=11 // pred_check
          %p196 = pneg %p121
        $region22: #{tpu_custom_call.1} parent=11 // pred_check_branch
          %198 = sbr.rel (%p196) target = $region24
        $region23: #{tpu_custom_call.1} parent=11 // pred_region
          %s200 = ssub.s32 1024, 1024
          %201 = vsyncadd [#allocation4], %s200
          %s202 = smul.addr %s25, 64
          %s203 = scalar_lea.hbm %s3, %s202
          %s204 = sshll.u32 [#allocation3], 4
          %s205 = int_to_ptr.vmem [resolvable:$true] %s204
          %210 = dma.hbm_to_vmem [thread:$0]  %s203, 1024, %s205, [#allocation4], 64, 64, 4
        $region24: #{tpu_custom_call.1} parent=11 // pred_fallthru
          _
        // Predicated region
        $region25: #{tpu_custom_call.1} parent=11 // pred_check
          %p211 = pneg %p147
        $region26: #{tpu_custom_call.1} parent=11 // pred_check_branch
          %213 = sbr.rel (%p211) target = $region28
        $region27: #{tpu_custom_call.1} parent=11 // pred_region
          %p214 = scmp.lt.s32.totalorder %s25, 0
          %s215 = scalar_select %p214, %s25, 0
          %s216 = scalar_lea.vmem %s4, %s215
        $region28: #{tpu_custom_call.1} parent=11 // pred_fallthru
          _
      $region12: #{tpu_custom_call.1} parent=5 // pred_fallthru
        _
      %p217 = scmp.lt.s32.totalorder %s15, 2
      // Predicated region
      $region29: #{tpu_custom_call.1} parent=5 // pred_check
        %p218 = pneg %p217
      $region30: #{tpu_custom_call.1} parent=5 // pred_check_branch
        %220 = sbr.rel (%p218) target = $region32
      $region31: #{tpu_custom_call.1} parent=5 // pred_region
        // Predicated region
        $region33: #{tpu_custom_call.1} parent=31 // pred_check
          %p221 = pneg %p47
        $region34: #{tpu_custom_call.1} parent=31 // pred_check_branch
          %223 = sbr.rel (%p221) target = $region36
        $region35: #{tpu_custom_call.1} parent=31 // pred_region
          %p224 = scmp.lt.s32.totalorder %s22, 1
          %s225 = scalar_select %p224, %s22, 1
          %s226 = smul.addr %s225, 4
          %s227 = smul.addr %s226, 4
          %s228 = scalar_lea.vmem %s0, %s227
        $region36: #{tpu_custom_call.1} parent=31 // pred_fallthru
          _
      $region32: #{tpu_custom_call.1} parent=5 // pred_fallthru
        _
      %p229 = scmp.le.s32.totalorder 1, %s15
      %p230 = scmp.lt.s32.totalorder %s15, 3
      %p231 = pnand %p229, %p230
      %p232 = pneg %p231
      // Predicated region
      $region37: #{tpu_custom_call.1} parent=5 // pred_check
        _
      $region38: #{tpu_custom_call.1} parent=5 // pred_check_branch
        %234 = sbr.rel (%p231) target = $region40
      $region39: #{tpu_custom_call.1} parent=5 // pred_region
        %s235 = ssub.s32 %s15, 1
        // Predicated region
        $region41: #{tpu_custom_call.1} parent=39 // pred_check
          %p236 = pneg %p121
        $region42: #{tpu_custom_call.1} parent=39 // pred_check_branch
          %238 = sbr.rel (%p236) target = $region44
        $region43: #{tpu_custom_call.1} parent=39 // pred_region
          %239 = dma.done [#allocation4], 1024
        $region44: #{tpu_custom_call.1} parent=39 // pred_fallthru
          _
        %p240 = scmp.lt.s32.totalorder %s24, 1
        %s241 = scalar_select %p240, %s24, 1
        %s242 = smul.addr %s241, 4
        %s243 = smul.addr %s242, 4
        %s244 = scalar_lea.vmem %s0, %s243
        %p245 = pneg %p53
        %p246 = pneg %p50
        %p247 = pneg %p74
        %p248 = pneg %p71
        %p249 = pneg %p95
        %p250 = pneg %p92
        %p251 = pneg %p121
        %p252 = pneg %p118
        %p253 = scmp.lt.s32.totalorder %s25, 0
        %s254 = scalar_select %p253, %s25, 0
        %s255 = scalar_lea.vmem %s4, %s254
        %p256 = pneg %p147
        %p257 = pneg %p144
        %p258 = pneg %p175
        %p259 = pneg %p172
        %s260 = sand.u32 %s162, 1
        %s261 = scalar_lea.sflag [#allocation5], %s260
        %s262 = sand.u32 %s162, 1
        %s263 = smul.addr %s262, 8
        %s264 = scalar_lea.vmem [#allocation6], %s263
        %p265 = scmp.lt.s32.totalorder %s24, 1
        %s266 = scalar_select %p265, %s24, 1
        %s267 = smul.addr %s266, 4
        %s268 = smul.addr %s267, 4
        %s269 = scalar_lea.vmem %s0, %s268
        %p270 = scmp.lt.s32.totalorder %s25, 0
        %s271 = scalar_select %p270, %s25, 0
        %s272 = scalar_lea.vmem %s4, %s271
        %p274 = scmp.eq.s32.totalorder %s25, 0
        // Predicated region
        $region45: #{tpu_custom_call.1} parent=39 // pred_check
          %p275 = pneg %p274
        $region46: #{tpu_custom_call.1} parent=39 // pred_check_branch
          %277 = sbr.rel (%p275) target = $region48
        $region47: #{tpu_custom_call.1} parent=39 // pred_region
          %v278 = vld [vmem:[%s269] sm:$0xf]
          %v279 = vld [vmem:[%s269 + $0x8] sm:$0x1]
          %v280 = vld [vmem:[%s1] sm:$0xf]
          %v281 = vld [vmem:[%s269] sm:$0xff]
          %v282 = vld [vmem:[%s269 + $0x8] sm:$0x11]
          %s283 = scalar_lea.vmem %s1, 4
          %v284 = vld [vmem:[%s283] sm:$0xf]
          %v287 = vunpack.c.l.b16 %v281
          %v288 = vunpack.c.h.b16 %v281
          %v289 = vunpack.c.l.b16 %v282
          %v290 = vunpack.c.h.b16 %v282
          %v291 = vpack.c.b16 %v289, %v287
          %v292 = vpack.c.b16 %v290, %v288
          %293 = vrot.lane.b32.xlu0 %v291, 127
          %v294 = vpop.permute.xlu0 %293
          %295 = vrot.lane.b32.xlu0 %v292, 127
          %v296 = vpop.permute.xlu0 %295
          %vm297 = vcmask 1039360
          %v298 = vsel %vm297, %v294, %v296
          %vm299 = vcmask 72704
          %v301 = vsel %vm299, %v284, 0
          %vm303 = vcmask 1043456
          %vm304 = vcmask 1044480
          %v305 = vsel %vm303, 4294967295, 65535
          %v306 = vsel %vm304, %v305, 0
          %v308 = vand.u32 %v298, %v306
          %310 = vmatprep.subr.bf16.mxu0 0
          %311 = vmatpush1.bf16.msra.mxu0 %v308
          %312 = vmatprep.subr.bf16.mxu0 0
          %313 = vmatpush1.bf16.msra.mxu0 0
          %314 = vmatprep.subr.bf16.mxu0 0
          %315 = vmatpush1.bf16.msra.mxu0 0
          %316 = vmatprep.subr.bf16.mxu0 0
          %317 = vmatpush1.bf16.msra.mxu0 0
          %318 = vmatprep.subr.bf16.mxu0 0
          %319 = vmatpush1.bf16.msra.mxu0 0
          %320 = vmatprep.subr.bf16.mxu0 0
          %321 = vmatpush1.bf16.msra.mxu0 0
          %322 = vmatprep.subr.bf16.mxu0 0
          %323 = vmatpush1.bf16.msra.mxu0 0
          %324 = vmatprep.subr.bf16.mxu0 0
          %325 = vmatpush1.bf16.msra.mxu0 0
          %326 = vmatprep.subr.bf16.mxu0 0
          %327 = vmatpush1.bf16.msra.mxu0 0
          %328 = vmatprep.subr.bf16.mxu0 0
          %329 = vmatpush1.bf16.msra.mxu0 0
          %330 = vmatprep.subr.bf16.mxu0 0
          %331 = vmatpush1.bf16.msra.mxu0 0
          %332 = vmatprep.subr.bf16.mxu0 0
          %333 = vmatpush1.bf16.msra.mxu0 0
          %334 = vmatprep.subr.bf16.mxu0 0
          %335 = vmatpush1.bf16.msra.mxu0 0
          %336 = vmatprep.subr.bf16.mxu0 0
          %337 = vmatpush1.bf16.msra.mxu0 0
          %338 = vmatprep.subr.bf16.mxu0 0
          %339 = vmatpush1.bf16.msra.mxu0 0
          %340 = vmatprep.subr.bf16.mxu0 0
          %341 = vmatpush1.bf16.msra.mxu0 0
          %342 = vmatprep.mubr.bf16.mxu0 0
          %343 = vmatmul.mubr.bf16.gmra.mrb[0].mxu0 %v301
          %v344 = vpop.f32.mrb[0].mxu0
          %v345 = vadd.f32 0.0, %v344
          %v346 = vpop.f32.mrb[0].mxu0
          %v347 = vpop.f32.mrb[0].mxu0
          %v348 = vpop.f32.mrb[0].mxu0
          %349 = vdwg.mxu0
          %v352 = vunpack.c.l.b16 %v278
          %v353 = vunpack.c.l.b16 %v279
          %v354 = vpack.c.b16 %v353, %v352
          %v356 = vsel %vm299, %v280, 0
          %v359 = vand.u32 %v354, %v306
          %361 = vmatprep.subr.bf16.mxu0 0
          %362 = vmatpush1.bf16.msra.mxu0 %v359
          %363 = vmatprep.subr.bf16.mxu0 0
          %364 = vmatpush1.bf16.msra.mxu0 0
          %365 = vmatprep.subr.bf16.mxu0 0
          %366 = vmatpush1.bf16.msra.mxu0 0
          %367 = vmatprep.subr.bf16.mxu0 0
          %368 = vmatpush1.bf16.msra.mxu0 0
          %369 = vmatprep.subr.bf16.mxu0 0
          %370 = vmatpush1.bf16.msra.mxu0 0
          %371 = vmatprep.subr.bf16.mxu0 0
          %372 = vmatpush1.bf16.msra.mxu0 0
          %373 = vmatprep.subr.bf16.mxu0 0
          %374 = vmatpush1.bf16.msra.mxu0 0
          %375 = vmatprep.subr.bf16.mxu0 0
          %376 = vmatpush1.bf16.msra.mxu0 0
          %377 = vmatprep.subr.bf16.mxu0 0
          %378 = vmatpush1.bf16.msra.mxu0 0
          %379 = vmatprep.subr.bf16.mxu0 0
          %380 = vmatpush1.bf16.msra.mxu0 0
          %381 = vmatprep.subr.bf16.mxu0 0
          %382 = vmatpush1.bf16.msra.mxu0 0
          %383 = vmatprep.subr.bf16.mxu0 0
          %384 = vmatpush1.bf16.msra.mxu0 0
          %385 = vmatprep.subr.bf16.mxu0 0
          %386 = vmatpush1.bf16.msra.mxu0 0
          %387 = vmatprep.subr.bf16.mxu0 0
          %388 = vmatpush1.bf16.msra.mxu0 0
          %389 = vmatprep.subr.bf16.mxu0 0
          %390 = vmatpush1.bf16.msra.mxu0 0
          %391 = vmatprep.subr.bf16.mxu0 0
          %392 = vmatpush1.bf16.msra.mxu0 0
          %393 = vmatprep.mubr.bf16.mxu0 0
          %394 = vmatmul.mubr.bf16.gmra.mrb[0].mxu0 %v356
          %v395 = vpop.f32.mrb[0].mxu0
          %v396 = vadd.f32 %v345, %v395
          %v397 = vpop.f32.mrb[0].mxu0
          %v398 = vpop.f32.mrb[0].mxu0
          %v399 = vpop.f32.mrb[0].mxu0
          %400 = vdwg.mxu0
          %s401 = scalar_lea.vmem %s1, 8
          %v402 = vld [vmem:[%s401] sm:$0xf]
          %403 = vrot.lane.b32.xlu0 %v291, 126
          %v404 = vpop.permute.xlu0 %403
          %405 = vrot.lane.b32.xlu0 %v292, 126
          %v406 = vpop.permute.xlu0 %405
          %vm407 = vcmask 1031168
          %v408 = vsel %vm407, %v404, %v406
          %v410 = vsel %vm299, %v402, 0
          %v413 = vand.u32 %v408, %v306
          %415 = vmatprep.subr.bf16.mxu0 0
          %416 = vmatpush1.bf16.msra.mxu0 %v413
          %417 = vmatprep.subr.bf16.mxu0 0
          %418 = vmatpush1.bf16.msra.mxu0 0
          %419 = vmatprep.subr.bf16.mxu0 0
          %420 = vmatpush1.bf16.msra.mxu0 0
          %421 = vmatprep.subr.bf16.mxu0 0
          %422 = vmatpush1.bf16.msra.mxu0 0
          %423 = vmatprep.subr.bf16.mxu0 0
          %424 = vmatpush1.bf16.msra.mxu0 0
          %425 = vmatprep.subr.bf16.mxu0 0
          %426 = vmatpush1.bf16.msra.mxu0 0
          %427 = vmatprep.subr.bf16.mxu0 0
          %428 = vmatpush1.bf16.msra.mxu0 0
          %429 = vmatprep.subr.bf16.mxu0 0
          %430 = vmatpush1.bf16.msra.mxu0 0
          %431 = vmatprep.subr.bf16.mxu0 0
          %432 = vmatpush1.bf16.msra.mxu0 0
          %433 = vmatprep.subr.bf16.mxu0 0
          %434 = vmatpush1.bf16.msra.mxu0 0
          %435 = vmatprep.subr.bf16.mxu0 0
          %436 = vmatpush1.bf16.msra.mxu0 0
          %437 = vmatprep.subr.bf16.mxu0 0
          %438 = vmatpush1.bf16.msra.mxu0 0
          %439 = vmatprep.subr.bf16.mxu0 0
          %440 = vmatpush1.bf16.msra.mxu0 0
          %441 = vmatprep.subr.bf16.mxu0 0
          %442 = vmatpush1.bf16.msra.mxu0 0
          %443 = vmatprep.subr.bf16.mxu0 0
          %444 = vmatpush1.bf16.msra.mxu0 0
          %445 = vmatprep.subr.bf16.mxu0 0
          %446 = vmatpush1.bf16.msra.mxu0 0
          %447 = vmatprep.mubr.bf16.mxu0 0
          %448 = vmatmul.mubr.bf16.gmra.mrb[0].mxu0 %v410
          %v449 = vpop.f32.mrb[0].mxu0
          %v450 = vadd.f32 0.0, %v449
          %v451 = vpop.f32.mrb[0].mxu0
          %v452 = vpop.f32.mrb[0].mxu0
          %v453 = vpop.f32.mrb[0].mxu0
          %454 = vdwg.mxu0
          %v455 = vadd.f32 %v396, %v450
          %s456 = scalar_lea.vmem %s1, 12
          %v457 = vld [vmem:[%s456] sm:$0xf]
          %458 = vrot.lane.b32.xlu0 %v291, 122
          %v459 = vpop.permute.xlu0 %458
          %460 = vrot.lane.b32.xlu0 %v292, 122
          %v461 = vpop.permute.xlu0 %460
          %vm462 = vcmask 998400
          %v463 = vsel %vm462, %v459, %v461
          %v465 = vsel %vm299, %v457, 0
          %v468 = vand.u32 %v463, %v306
          %470 = vmatprep.subr.bf16.mxu0 0
          %471 = vmatpush1.bf16.msra.mxu0 %v468
          %472 = vmatprep.subr.bf16.mxu0 0
          %473 = vmatpush1.bf16.msra.mxu0 0
          %474 = vmatprep.subr.bf16.mxu0 0
          %475 = vmatpush1.bf16.msra.mxu0 0
          %476 = vmatprep.subr.bf16.mxu0 0
          %477 = vmatpush1.bf16.msra.mxu0 0
          %478 = vmatprep.subr.bf16.mxu0 0
          %479 = vmatpush1.bf16.msra.mxu0 0
          %480 = vmatprep.subr.bf16.mxu0 0
          %481 = vmatpush1.bf16.msra.mxu0 0
          %482 = vmatprep.subr.bf16.mxu0 0
          %483 = vmatpush1.bf16.msra.mxu0 0
          %484 = vmatprep.subr.bf16.mxu0 0
          %485 = vmatpush1.bf16.msra.mxu0 0
          %486 = vmatprep.subr.bf16.mxu0 0
          %487 = vmatpush1.bf16.msra.mxu0 0
          %488 = vmatprep.subr.bf16.mxu0 0
          %489 = vmatpush1.bf16.msra.mxu0 0
          %490 = vmatprep.subr.bf16.mxu0 0
          %491 = vmatpush1.bf16.msra.mxu0 0
          %492 = vmatprep.subr.bf16.mxu0 0
          %493 = vmatpush1.bf16.msra.mxu0 0
          %494 = vmatprep.subr.bf16.mxu0 0
          %495 = vmatpush1.bf16.msra.mxu0 0
          %496 = vmatprep.subr.bf16.mxu0 0
          %497 = vmatpush1.bf16.msra.mxu0 0
          %498 = vmatprep.subr.bf16.mxu0 0
          %499 = vmatpush1.bf16.msra.mxu0 0
          %500 = vmatprep.subr.bf16.mxu0 0
          %501 = vmatpush1.bf16.msra.mxu0 0
          %502 = vmatprep.mubr.bf16.mxu0 0
          %503 = vmatmul.mubr.bf16.gmra.mrb[0].mxu0 %v465
          %v504 = vpop.f32.mrb[0].mxu0
          %v505 = vadd.f32 0.0, %v504
          %v506 = vpop.f32.mrb[0].mxu0
          %v507 = vpop.f32.mrb[0].mxu0
          %v508 = vpop.f32.mrb[0].mxu0
          %509 = vdwg.mxu0
          %v510 = vadd.f32 %v455, %v505
          %s511 = scalar_lea.vmem %s1, 16
          %v512 = vld [vmem:[%s511] sm:$0xf]
          %513 = vrot.lane.b32.xlu0 %v291, 121
          %v514 = vpop.permute.xlu0 %513
          %515 = vrot.lane.b32.xlu0 %v292, 121
          %v516 = vpop.permute.xlu0 %515
          %vm517 = vcmask 990208
          %v518 = vsel %vm517, %v514, %v516
          %v520 = vsel %vm299, %v512, 0
          %v523 = vand.u32 %v518, %v306
          %525 = vmatprep.subr.bf16.mxu0 0
          %526 = vmatpush1.bf16.msra.mxu0 %v523
          %527 = vmatprep.subr.bf16.mxu0 0
          %528 = vmatpush1.bf16.msra.mxu0 0
          %529 = vmatprep.subr.bf16.mxu0 0
          %530 = vmatpush1.bf16.msra.mxu0 0
          %531 = vmatprep.subr.bf16.mxu0 0
          %532 = vmatpush1.bf16.msra.mxu0 0
          %533 = vmatprep.subr.bf16.mxu0 0
          %534 = vmatpush1.bf16.msra.mxu0 0
          %535 = vmatprep.subr.bf16.mxu0 0
          %536 = vmatpush1.bf16.msra.mxu0 0
          %537 = vmatprep.subr.bf16.mxu0 0
          %538 = vmatpush1.bf16.msra.mxu0 0
          %539 = vmatprep.subr.bf16.mxu0 0
          %540 = vmatpush1.bf16.msra.mxu0 0
          %541 = vmatprep.subr.bf16.mxu0 0
          %542 = vmatpush1.bf16.msra.mxu0 0
          %543 = vmatprep.subr.bf16.mxu0 0
          %544 = vmatpush1.bf16.msra.mxu0 0
          %545 = vmatprep.subr.bf16.mxu0 0
          %546 = vmatpush1.bf16.msra.mxu0 0
          %547 = vmatprep.subr.bf16.mxu0 0
          %548 = vmatpush1.bf16.msra.mxu0 0
          %549 = vmatprep.subr.bf16.mxu0 0
          %550 = vmatpush1.bf16.msra.mxu0 0
          %551 = vmatprep.subr.bf16.mxu0 0
          %552 = vmatpush1.bf16.msra.mxu0 0
          %553 = vmatprep.subr.bf16.mxu0 0
          %554 = vmatpush1.bf16.msra.mxu0 0
          %555 = vmatprep.subr.bf16.mxu0 0
          %556 = vmatpush1.bf16.msra.mxu0 0
          %557 = vmatprep.mubr.bf16.mxu0 0
          %558 = vmatmul.mubr.bf16.gmra.mrb[0].mxu0 %v520
          %v559 = vpop.f32.mrb[0].mxu0
          %v560 = vadd.f32 0.0, %v559
          %v561 = vpop.f32.mrb[0].mxu0
          %v562 = vpop.f32.mrb[0].mxu0
          %v563 = vpop.f32.mrb[0].mxu0
          %564 = vdwg.mxu0
          %v565 = vadd.f32 %v510, %v560
          %s566 = scalar_lea.vmem %s1, 20
          %v567 = vld [vmem:[%s566] sm:$0xf]
          %568 = vrot.lane.b32.xlu0 %v291, 120
          %v569 = vpop.permute.xlu0 %568
          %570 = vrot.lane.b32.xlu0 %v292, 120
          %v571 = vpop.permute.xlu0 %570
          %vm572 = vcmask 982016
          %v573 = vsel %vm572, %v569, %v571
          %v575 = vsel %vm299, %v567, 0
          %v578 = vand.u32 %v573, %v306
          %580 = vmatprep.subr.bf16.mxu0 0
          %581 = vmatpush1.bf16.msra.mxu0 %v578
          %582 = vmatprep.subr.bf16.mxu0 0
          %583 = vmatpush1.bf16.msra.mxu0 0
          %584 = vmatprep.subr.bf16.mxu0 0
          %585 = vmatpush1.bf16.msra.mxu0 0
          %586 = vmatprep.subr.bf16.mxu0 0
          %587 = vmatpush1.bf16.msra.mxu0 0
          %588 = vmatprep.subr.bf16.mxu0 0
          %589 = vmatpush1.bf16.msra.mxu0 0
          %590 = vmatprep.subr.bf16.mxu0 0
          %591 = vmatpush1.bf16.msra.mxu0 0
          %592 = vmatprep.subr.bf16.mxu0 0
          %593 = vmatpush1.bf16.msra.mxu0 0
          %594 = vmatprep.subr.bf16.mxu0 0
          %595 = vmatpush1.bf16.msra.mxu0 0
          %596 = vmatprep.subr.bf16.mxu0 0
          %597 = vmatpush1.bf16.msra.mxu0 0
          %598 = vmatprep.subr.bf16.mxu0 0
          %599 = vmatpush1.bf16.msra.mxu0 0
          %600 = vmatprep.subr.bf16.mxu0 0
          %601 = vmatpush1.bf16.msra.mxu0 0
          %602 = vmatprep.subr.bf16.mxu0 0
          %603 = vmatpush1.bf16.msra.mxu0 0
          %604 = vmatprep.subr.bf16.mxu0 0
          %605 = vmatpush1.bf16.msra.mxu0 0
          %606 = vmatprep.subr.bf16.mxu0 0
          %607 = vmatpush1.bf16.msra.mxu0 0
          %608 = vmatprep.subr.bf16.mxu0 0
          %609 = vmatpush1.bf16.msra.mxu0 0
          %610 = vmatprep.subr.bf16.mxu0 0
          %611 = vmatpush1.bf16.msra.mxu0 0
          %612 = vmatprep.mubr.bf16.mxu0 0
          %613 = vmatmul.mubr.bf16.gmra.mrb[0].mxu0 %v575
          %v614 = vpop.f32.mrb[0].mxu0
          %v615 = vadd.f32 0.0, %v614
          %v616 = vpop.f32.mrb[0].mxu0
          %v617 = vpop.f32.mrb[0].mxu0
          %v618 = vpop.f32.mrb[0].mxu0
          %619 = vdwg.mxu0
          %v620 = vadd.f32 %v565, %v615
          %s621 = scalar_lea.vmem %s1, 24
          %v622 = vld [vmem:[%s621] sm:$0xf]
          %623 = vrot.lane.b32.xlu0 %v291, 116
          %v624 = vpop.permute.xlu0 %623
          %625 = vrot.lane.b32.xlu0 %v292, 116
          %v626 = vpop.permute.xlu0 %625
          %vm627 = vcmask 949248
          %v628 = vsel %vm627, %v624, %v626
          %v630 = vsel %vm299, %v622, 0
          %v633 = vand.u32 %v628, %v306
          %635 = vmatprep.subr.bf16.mxu0 0
          %636 = vmatpush1.bf16.msra.mxu0 %v633
          %637 = vmatprep.subr.bf16.mxu0 0
          %638 = vmatpush1.bf16.msra.mxu0 0
          %639 = vmatprep.subr.bf16.mxu0 0
          %640 = vmatpush1.bf16.msra.mxu0 0
          %641 = vmatprep.subr.bf16.mxu0 0
          %642 = vmatpush1.bf16.msra.mxu0 0
          %643 = vmatprep.subr.bf16.mxu0 0
          %644 = vmatpush1.bf16.msra.mxu0 0
          %645 = vmatprep.subr.bf16.mxu0 0
          %646 = vmatpush1.bf16.msra.mxu0 0
          %647 = vmatprep.subr.bf16.mxu0 0
          %648 = vmatpush1.bf16.msra.mxu0 0
          %649 = vmatprep.subr.bf16.mxu0 0
          %650 = vmatpush1.bf16.msra.mxu0 0
          %651 = vmatprep.subr.bf16.mxu0 0
          %652 = vmatpush1.bf16.msra.mxu0 0
          %653 = vmatprep.subr.bf16.mxu0 0
          %654 = vmatpush1.bf16.msra.mxu0 0
          %655 = vmatprep.subr.bf16.mxu0 0
          %656 = vmatpush1.bf16.msra.mxu0 0
          %657 = vmatprep.subr.bf16.mxu0 0
          %658 = vmatpush1.bf16.msra.mxu0 0
          %659 = vmatprep.subr.bf16.mxu0 0
          %660 = vmatpush1.bf16.msra.mxu0 0
          %661 = vmatprep.subr.bf16.mxu0 0
          %662 = vmatpush1.bf16.msra.mxu0 0
          %663 = vmatprep.subr.bf16.mxu0 0
          %664 = vmatpush1.bf16.msra.mxu0 0
          %665 = vmatprep.subr.bf16.mxu0 0
          %666 = vmatpush1.bf16.msra.mxu0 0
          %667 = vmatprep.mubr.bf16.mxu0 0
          %668 = vmatmul.mubr.bf16.gmra.mrb[0].mxu0 %v630
          %v669 = vpop.f32.mrb[0].mxu0
          %v670 = vadd.f32 0.0, %v669
          %v671 = vpop.f32.mrb[0].mxu0
          %v672 = vpop.f32.mrb[0].mxu0
          %v673 = vpop.f32.mrb[0].mxu0
          %674 = vdwg.mxu0
          %v675 = vadd.f32 %v620, %v670
          %s676 = scalar_lea.vmem %s1, 28
          %v677 = vld [vmem:[%s676] sm:$0xf]
          %678 = vrot.lane.b32.xlu0 %v291, 115
          %v679 = vpop.permute.xlu0 %678
          %680 = vrot.lane.b32.xlu0 %v292, 115
          %v681 = vpop.permute.xlu0 %680
          %vm682 = vcmask 941056
          %v683 = vsel %vm682, %v679, %v681
          %v685 = vsel %vm299, %v677, 0
          %v688 = vand.u32 %v683, %v306
          %690 = vmatprep.subr.bf16.mxu0 0
          %691 = vmatpush1.bf16.msra.mxu0 %v688
          %692 = vmatprep.subr.bf16.mxu0 0
          %693 = vmatpush1.bf16.msra.mxu0 0
          %694 = vmatprep.subr.bf16.mxu0 0
          %695 = vmatpush1.bf16.msra.mxu0 0
          %696 = vmatprep.subr.bf16.mxu0 0
          %697 = vmatpush1.bf16.msra.mxu0 0
          %698 = vmatprep.subr.bf16.mxu0 0
          %699 = vmatpush1.bf16.msra.mxu0 0
          %700 = vmatprep.subr.bf16.mxu0 0
          %701 = vmatpush1.bf16.msra.mxu0 0
          %702 = vmatprep.subr.bf16.mxu0 0
          %703 = vmatpush1.bf16.msra.mxu0 0
          %704 = vmatprep.subr.bf16.mxu0 0
          %705 = vmatpush1.bf16.msra.mxu0 0
          %706 = vmatprep.subr.bf16.mxu0 0
          %707 = vmatpush1.bf16.msra.mxu0 0
          %708 = vmatprep.subr.bf16.mxu0 0
          %709 = vmatpush1.bf16.msra.mxu0 0
          %710 = vmatprep.subr.bf16.mxu0 0
          %711 = vmatpush1.bf16.msra.mxu0 0
          %712 = vmatprep.subr.bf16.mxu0 0
          %713 = vmatpush1.bf16.msra.mxu0 0
          %714 = vmatprep.subr.bf16.mxu0 0
          %715 = vmatpush1.bf16.msra.mxu0 0
          %716 = vmatprep.subr.bf16.mxu0 0
          %717 = vmatpush1.bf16.msra.mxu0 0
          %718 = vmatprep.subr.bf16.mxu0 0
          %719 = vmatpush1.bf16.msra.mxu0 0
          %720 = vmatprep.subr.bf16.mxu0 0
          %721 = vmatpush1.bf16.msra.mxu0 0
          %722 = vmatprep.mubr.bf16.mxu0 0
          %723 = vmatmul.mubr.bf16.gmra.mrb[0].mxu0 %v685
          %v724 = vpop.f32.mrb[0].mxu0
          %v725 = vadd.f32 0.0, %v724
          %v726 = vpop.f32.mrb[0].mxu0
          %v727 = vpop.f32.mrb[0].mxu0
          %v728 = vpop.f32.mrb[0].mxu0
          %729 = vdwg.mxu0
          %v730 = vadd.f32 %v675, %v725
          %s731 = scalar_lea.vmem %s1, 32
          %v732 = vld [vmem:[%s731] sm:$0xf]
          %733 = vrot.lane.b32.xlu0 %v291, 114
          %v734 = vpop.permute.xlu0 %733
          %735 = vrot.lane.b32.xlu0 %v292, 114
          %v736 = vpop.permute.xlu0 %735
          %vm737 = vcmask 932864
          %v738 = vsel %vm737, %v734, %v736
          %v740 = vsel %vm299, %v732, 0
          %v743 = vand.u32 %v738, %v306
          %745 = vmatprep.subr.bf16.mxu0 0
          %746 = vmatpush1.bf16.msra.mxu0 %v743
          %747 = vmatprep.subr.bf16.mxu0 0
          %748 = vmatpush1.bf16.msra.mxu0 0
          %749 = vmatprep.subr.bf16.mxu0 0
          %750 = vmatpush1.bf16.msra.mxu0 0
          %751 = vmatprep.subr.bf16.mxu0 0
          %752 = vmatpush1.bf16.msra.mxu0 0
          %753 = vmatprep.subr.bf16.mxu0 0
          %754 = vmatpush1.bf16.msra.mxu0 0
          %755 = vmatprep.subr.bf16.mxu0 0
          %756 = vmatpush1.bf16.msra.mxu0 0
          %757 = vmatprep.subr.bf16.mxu0 0
          %758 = vmatpush1.bf16.msra.mxu0 0
          %759 = vmatprep.subr.bf16.mxu0 0
          %760 = vmatpush1.bf16.msra.mxu0 0
          %761 = vmatprep.subr.bf16.mxu0 0
          %762 = vmatpush1.bf16.msra.mxu0 0
          %763 = vmatprep.subr.bf16.mxu0 0
          %764 = vmatpush1.bf16.msra.mxu0 0
          %765 = vmatprep.subr.bf16.mxu0 0
          %766 = vmatpush1.bf16.msra.mxu0 0
          %767 = vmatprep.subr.bf16.mxu0 0
          %768 = vmatpush1.bf16.msra.mxu0 0
          %769 = vmatprep.subr.bf16.mxu0 0
          %770 = vmatpush1.bf16.msra.mxu0 0
          %771 = vmatprep.subr.bf16.mxu0 0
          %772 = vmatpush1.bf16.msra.mxu0 0
          %773 = vmatprep.subr.bf16.mxu0 0
          %774 = vmatpush1.bf16.msra.mxu0 0
          %775 = vmatprep.subr.bf16.mxu0 0
          %776 = vmatpush1.bf16.msra.mxu0 0
          %777 = vmatprep.mubr.bf16.mxu0 0
          %778 = vmatmul.mubr.bf16.gmra.mrb[0].mxu0 %v740
          %v779 = vpop.f32.mrb[0].mxu0
          %v780 = vadd.f32 0.0, %v779
          %v781 = vpop.f32.mrb[0].mxu0
          %v782 = vpop.f32.mrb[0].mxu0
          %v783 = vpop.f32.mrb[0].mxu0
          %784 = vdwg.mxu0
          %v785 = vadd.f32 %v730, %v780
          %v786 = vld [vmem:[%s2] sm:$0x1]
          %v788 = vlaneseq
          %v789 = vshrl.u32 %v788, 7
          %v790 = vsub.s32 0, %v789
          %v791 = vrot.slane %v786, %v790
          %v793 = vmul.f32 %v785, %v791
          %v794 = vpack.c.bf16 %v793, %v793
          %795 = vmatprep.subr.bf16.mxu0 0
          %796 = vmatpush1.bf16.xpose.msra.mxu0 %v794
          %797 = vmatprep.subr.bf16.mxu0 0
          %798 = vmatpush1.bf16.xpose.msra.mxu0 0
          %799 = vmatprep.subr.bf16.mxu0 0
          %800 = vmatpush1.bf16.xpose.msra.mxu0 0
          %801 = vmatprep.subr.bf16.mxu0 0
          %802 = vmatpush1.bf16.xpose.msra.mxu0 0
          %803 = vmatprep.subr.bf16.mxu0 0
          %804 = vmatpush1.bf16.xpose.msra.mxu0 0
          %805 = vmatprep.subr.bf16.mxu0 0
          %806 = vmatpush1.bf16.xpose.msra.mxu0 0
          %807 = vmatprep.subr.bf16.mxu0 0
          %808 = vmatpush1.bf16.xpose.msra.mxu0 0
          %809 = vmatprep.subr.bf16.mxu0 0
          %810 = vmatpush1.bf16.xpose.msra.mxu0 0
          %811 = vmatprep.subr.bf16.mxu0 0
          %812 = vmatpush1.bf16.xpose.msra.mxu0 0
          %813 = vmatprep.subr.bf16.mxu0 0
          %814 = vmatpush1.bf16.xpose.msra.mxu0 0
          %815 = vmatprep.subr.bf16.mxu0 0
          %816 = vmatpush1.bf16.xpose.msra.mxu0 0
          %817 = vmatprep.subr.bf16.mxu0 0
          %818 = vmatpush1.bf16.xpose.msra.mxu0 0
          %819 = vmatprep.subr.bf16.mxu0 0
          %820 = vmatpush1.bf16.xpose.msra.mxu0 0
          %821 = vmatprep.subr.bf16.mxu0 0
          %822 = vmatpush1.bf16.xpose.msra.mxu0 0
          %823 = vmatprep.subr.bf16.mxu0 0
          %824 = vmatpush1.bf16.xpose.msra.mxu0 0
          %825 = vmatprep.subr.bf16.mxu0 0
          %826 = vmatpush1.bf16.xpose.msra.mxu0 0
          %827 = vmatprep.mubr.bf16.mxu0 0
          %828 = vmatmul.mubr.bf16.gmra.mrb[0].mxu0 %v794
          %v829 = vpop.f32.mrb[0].mxu0
          %v830 = vadd.f32 0.0, %v829
          %v831 = vpop.f32.mrb[0].mxu0
          %v832 = vpop.f32.mrb[0].mxu0
          %v833 = vpop.f32.mrb[0].mxu0
          %834 = vdwg.mxu0
          %v835 = vmul.f32 %v830, 0.25
          %vm836 = vcmask 64512
          %v837 = vsel %vm836, %v835, -inf
          %838 = vmax.xlane.f32.xlu0 %v837
          %v839 = vpop.xlane.xlu0 %838
          %v840 = vsub.f32 %v835, %v839
          %v841 = vmul.f32 %v840, 1.442695
          %v842 = vpow.pop %v841
          %v843 = vsel %vm836, %v842, 0.0
          %844 = vadd.xlane.f32.xlu0 %v843
          %v845 = vpop.xlane.xlu0 %844
          %v846 = vrcp.pop %v845
          %v847 = vmul.f32 %v842, %v846
          %v848 = vpack.c.bf16 %v847, %v847
          %v850 = vsel %vm836, %v848, 0
          %v853 = vsel %vm303, %v794, 0
          %855 = vmatprep.subr.bf16.mxu0 0
          %856 = vmatpush1.bf16.msra.mxu0 %v853
          %857 = vmatprep.subr.bf16.mxu0 0
          %858 = vmatpush1.bf16.msra.mxu0 0
          %859 = vmatprep.subr.bf16.mxu0 0
          %860 = vmatpush1.bf16.msra.mxu0 0
          %861 = vmatprep.subr.bf16.mxu0 0
          %862 = vmatpush1.bf16.msra.mxu0 0
          %863 = vmatprep.subr.bf16.mxu0 0
          %864 = vmatpush1.bf16.msra.mxu0 0
          %865 = vmatprep.subr.bf16.mxu0 0
          %866 = vmatpush1.bf16.msra.mxu0 0
          %867 = vmatprep.subr.bf16.mxu0 0
          %868 = vmatpush1.bf16.msra.mxu0 0
          %869 = vmatprep.subr.bf16.mxu0 0
          %870 = vmatpush1.bf16.msra.mxu0 0
          %871 = vmatprep.subr.bf16.mxu0 0
          %872 = vmatpush1.bf16.msra.mxu0 0
          %873 = vmatprep.subr.bf16.mxu0 0
          %874 = vmatpush1.bf16.msra.mxu0 0
          %875 = vmatprep.subr.bf16.mxu0 0
          %876 = vmatpush1.bf16.msra.mxu0 0
          %877 = vmatprep.subr.bf16.mxu0 0
          %878 = vmatpush1.bf16.msra.mxu0 0
          %879 = vmatprep.subr.bf16.mxu0 0
          %880 = vmatpush1.bf16.msra.mxu0 0
          %881 = vmatprep.subr.bf16.mxu0 0
          %882 = vmatpush1.bf16.msra.mxu0 0
          %883 = vmatprep.subr.bf16.mxu0 0
          %884 = vmatpush1.bf16.msra.mxu0 0
          %885 = vmatprep.subr.bf16.mxu0 0
          %886 = vmatpush1.bf16.msra.mxu0 0
          %887 = vmatprep.mubr.bf16.mxu0 0
          %888 = vmatmul.mubr.bf16.gmra.mrb[0].mxu0 %v850
          %v889 = vpop.f32.mrb[0].mxu0
          %v890 = vadd.f32 0.0, %v889
          %v891 = vpop.f32.mrb[0].mxu0
          %v892 = vpop.f32.mrb[0].mxu0
          %v893 = vpop.f32.mrb[0].mxu0
          %894 = vdwg.mxu0
          %v895 = vpack.c.bf16 %v890, %v890
          %896 = vst [vmem:[#allocation2] sm:$0xf] %v895
        $region48: #{tpu_custom_call.1} parent=39 // pred_fallthru
          _
        %v897 = vld [vmem:[#allocation2] sm:$0xf]
        %v898 = vld [vmem:[#allocation3] sm:$0xf]
        %v899 = vld [vmem:[#allocation3 + $0x4] sm:$0xf]
        %v900 = vld [vmem:[#allocation3 + $0x8] sm:$0xf]
        %v901 = vld [vmem:[#allocation3 + $0xc] sm:$0xf]
        %v902 = vld [vmem:[#allocation3 + $0x10] sm:$0xf]
        %v903 = vld [vmem:[#allocation3 + $0x14] sm:$0xf]
        %v904 = vld [vmem:[#allocation3 + $0x18] sm:$0xf]
        %v905 = vld [vmem:[#allocation3 + $0x1c] sm:$0xf]
        %v906 = vld [vmem:[#allocation3 + $0x20] sm:$0xf]
        %v907 = vld [vmem:[#allocation3 + $0x24] sm:$0xf]
        %v908 = vld [vmem:[#allocation3 + $0x28] sm:$0xf]
        %v909 = vld [vmem:[#allocation3 + $0x2c] sm:$0xf]
        %v910 = vld [vmem:[#allocation3 + $0x30] sm:$0xf]
        %v911 = vld [vmem:[#allocation3 + $0x34] sm:$0xf]
        %v912 = vld [vmem:[#allocation3 + $0x38] sm:$0xf]
        %v913 = vld [vmem:[#allocation3 + $0x3c] sm:$0xf]
        %v914 = vld [vmem:[%s272] sm:$0x1]
        %v916 = vlaneseq
        %v917 = vshrl.u32 %v916, 7
        %v918 = vsub.s32 0, %v917
        %v919 = vrot.slane %v914, %v918
        %v937 = vunpack.c.l.b16 %v898
        %v938 = vunpack.c.l.b16 %v899
        %v939 = vunpack.c.l.b16 %v900
        %v940 = vunpack.c.l.b16 %v901
        %v941 = vunpack.c.l.b16 %v902
        %v942 = vunpack.c.l.b16 %v903
        %v943 = vunpack.c.l.b16 %v904
        %v944 = vunpack.c.l.b16 %v905
        %v945 = vunpack.c.l.b16 %v906
        %v946 = vunpack.c.l.b16 %v907
        %v947 = vunpack.c.l.b16 %v908
        %v948 = vunpack.c.l.b16 %v909
        %v949 = vunpack.c.l.b16 %v910
        %v950 = vunpack.c.l.b16 %v911
        %v951 = vunpack.c.l.b16 %v912
        %v952 = vunpack.c.l.b16 %v913
        %v953 = vpack.c.b16 %v938, %v937
        %v954 = vpack.c.b16 %v940, %v939
        %v955 = vpack.c.b16 %v942, %v941
        %v956 = vpack.c.b16 %v944, %v943
        %v957 = vpack.c.b16 %v946, %v945
        %v958 = vpack.c.b16 %v948, %v947
        %v959 = vpack.c.b16 %v950, %v949
        %v960 = vpack.c.b16 %v952, %v951
        %969 = vmatprep.subr.bf16.mxu0 0
        %970 = vmatpush1.bf16.msra.mxu0 %v953
        %971 = vmatprep.subr.bf16.mxu0 0
        %972 = vmatpush1.bf16.msra.mxu0 %v954
        %973 = vmatprep.subr.bf16.mxu0 0
        %974 = vmatpush1.bf16.msra.mxu0 %v955
        %975 = vmatprep.subr.bf16.mxu0 0
        %976 = vmatpush1.bf16.msra.mxu0 %v956
        %977 = vmatprep.subr.bf16.mxu0 0
        %978 = vmatpush1.bf16.msra.mxu0 %v957
        %979 = vmatprep.subr.bf16.mxu0 0
        %980 = vmatpush1.bf16.msra.mxu0 %v958
        %981 = vmatprep.subr.bf16.mxu0 0
        %982 = vmatpush1.bf16.msra.mxu0 %v959
        %983 = vmatprep.subr.bf16.mxu0 0
        %984 = vmatpush1.bf16.msra.mxu0 %v960
        %985 = vmatprep.subr.bf16.mxu0 0
        %986 = vmatpush1.bf16.msra.mxu0 0
        %987 = vmatprep.subr.bf16.mxu0 0
        %988 = vmatpush1.bf16.msra.mxu0 0
        %989 = vmatprep.subr.bf16.mxu0 0
        %990 = vmatpush1.bf16.msra.mxu0 0
        %991 = vmatprep.subr.bf16.mxu0 0
        %992 = vmatpush1.bf16.msra.mxu0 0
        %993 = vmatprep.subr.bf16.mxu0 0
        %994 = vmatpush1.bf16.msra.mxu0 0
        %995 = vmatprep.subr.bf16.mxu0 0
        %996 = vmatpush1.bf16.msra.mxu0 0
        %997 = vmatprep.subr.bf16.mxu0 0
        %998 = vmatpush1.bf16.msra.mxu0 0
        %999 = vmatprep.subr.bf16.mxu0 0
        %1000 = vmatpush1.bf16.msra.mxu0 0
        %1001 = vmatprep.mubr.bf16.mxu0 0
        %1002 = vmatmul.mubr.bf16.gmra.mrb[0].mxu0 %v897
        %v1003 = vpop.f32.mrb[0].mxu0
        %v1004 = vadd.f32 %v919, %v1003
        %v1005 = vpop.f32.mrb[0].mxu0
        %v1006 = vpop.f32.mrb[0].mxu0
        %v1007 = vpop.f32.mrb[0].mxu0
        %1008 = vdwg.mxu0
        %1009 = vst [vmem:[%s264] sm:$0xff] %v1004
        %s1010 = sand.u32 %s162, 1
        %s1011 = scalar_lea.sflag [#allocation5], %s1010
        %s1012 = sand.u32 %s162, 1
        %s1013 = smul.addr %s1012, 8
        %s1014 = scalar_lea.vmem [#allocation6], %s1013
        // Predicated region
        $region49: #{tpu_custom_call.1} parent=39 // pred_check
          %p1015 = pneg %p172
        $region50: #{tpu_custom_call.1} parent=39 // pred_check_branch
          %1017 = sbr.rel (%p1015) target = $region52
        $region51: #{tpu_custom_call.1} parent=39 // pred_region
          %s1019 = ssub.s32 128, 128
          %1020 = vsyncadd %s1011, %s1019
          %s1021 = sadd.s32 %s25, %s24
          %s1022 = smul.addr %s1021, 128
          %s1023 = scalar_lea.hbm %s5, %s1022
          %s1025 = sshll.u32 %s1014, 4
          %s1026 = int_to_ptr.vmem [resolvable:$true] %s1025
          %1028 = dma.vmem_to_hbm [thread:$0]  %s1026, 128, %s1023, %s1011
        $region52: #{tpu_custom_call.1} parent=39 // pred_fallthru
          _
      $region40: #{tpu_custom_call.1} parent=5 // pred_fallthru
        _
      %p1029 = scmp.le.s32.totalorder 2, %s15
      // Predicated region
      $region53: #{tpu_custom_call.1} parent=5 // pred_check
        %p1030 = pneg %p1029
      $region54: #{tpu_custom_call.1} parent=5 // pred_check_branch
        %1032 = sbr.rel (%p1030) target = $region56
      $region55: #{tpu_custom_call.1} parent=5 // pred_region
        %s1033 = ssub.s32 %s15, 2
        // Predicated region
        $region57: #{tpu_custom_call.1} parent=55 // pred_check
          %p1034 = pneg %p178
        $region58: #{tpu_custom_call.1} parent=55 // pred_check_branch
          %1036 = sbr.rel (%p1034) target = $region60
        $region59: #{tpu_custom_call.1} parent=55 // pred_region
          %s1037 = sand.u32 %s163, 1
          %s1038 = scalar_lea.sflag [#allocation5], %s1037
          %s1039 = sand.u32 %s163, 1
          %s1040 = smul.addr %s1039, 8
          %s1041 = scalar_lea.vmem [#allocation6], %s1040
          %1042 = dma.done %s1038, 128
        $region60: #{tpu_custom_call.1} parent=55 // pred_fallthru
          _
      $region56: #{tpu_custom_call.1} parent=5 // pred_fallthru
        _
    $region6: #{tpu_custom_call.1} parent=1 // loop_footer
      %s19 = sadd.s32 1, %s15
    $region7: #{tpu_custom_call.1} parent=1 // loop_footer_branch
      %14 = sbr.rel target = $region3
    $region8: #{tpu_custom_call.1} parent=1 // loop_exit
      _
    %1043 = vsyncpa [#allocation4], 1
    %s1044 = scalar_lea.sflag [#allocation4], 1
    %1045 = vsyncpa %s1044, 1
    %1046 = vsyncpa [#allocation5], 1
    %s1047 = scalar_lea.sflag [#allocation5], 1
    %1048 = vsyncpa %s1047, 1

</llo_original>
